<compile_context>
chip_gen: v7x
topology: tpu7x:2x2x1
jax: 0.10.0
libtpu: 0.0.40
codegen_flags: <defaults>
</compile_context>

<pallas_src>
import jax
import jax.numpy as jnp
from jax.experimental import pallas as pl
from jax.experimental.pallas import tpu as pltpu


def gatev2_kernel(xi_ref, xj_ref, eij_ref, v_ref,
                  w1k_ref, w1i_ref, b1_ref, w2_ref, b2_ref, o_ref):
    # agg_k = elementwise sum over (x_j, e_ij, v)            (VPU)
    k = xj_ref[...] + eij_ref[...] + v_ref[...]
    # lin1(concat([k, x_i])) == k @ W1[:in] + x_i @ W1[in:]  (MXU, f32 acc)
    h = jnp.dot(k, w1k_ref[...], preferred_element_type=jnp.float32)
    h = h + jnp.dot(xi_ref[...], w1i_ref[...], preferred_element_type=jnp.float32)
    h = h + b1_ref[...]                                      # (1, hidden) broadcast
    # leaky_relu (torch default negative_slope = 0.01)
    h = jnp.where(h > 0, h, 0.01 * h)
    # lin2 + tanh                                            (MXU + EUP)
    y = jnp.dot(h, w2_ref[...], preferred_element_type=jnp.float32) + b2_ref[...]
    o_ref[...] = jnp.tanh(y).astype(o_ref.dtype)


def _round_up(x, m):
    return ((x + m - 1) // m) * m


def _choose_tile(n, tm):
    """Pick the row-tile size: multiple of 8, <= ceil8(n), keep >=8 blocks
    for megacore sharding when that still leaves >=1024-row tiles."""
    tm = max(8, min(_round_up(tm, 8), _round_up(n, 8)))
    cap = _round_up(pl.cdiv(n, 8), 8)      # tile size that yields ~8 blocks
    if cap >= 1024:                        # only shrink if tiles stay big
        tm = min(tm, cap)
    return tm


def gatev2_forward(x_i, x_j, e_ij, v, w1, b1, w2, b2, *, tm=4096):
    """w1: (2*in_size, hidden); w2: (hidden, out_size); biases 1-D."""
    n, f_in = x_i.shape
    assert w1.shape[0] == 2 * f_in, "lin1 expects in_size*(k_s+1) inputs with k_s=1"
    hidden = w1.shape[1]
    f_out = w2.shape[1]

    # Split lin1 weight: rows [:f_in] act on k, rows [f_in:] act on x_i
    # (matches torch.cat([k, x_i], dim=-1) ordering).
    w1_k = w1[:f_in]
    w1_i = w1[f_in:]
    b1_2d = b1.reshape(1, hidden)
    b2_2d = b2.reshape(1, f_out)

    tm = _choose_tile(n, tm)
    grid = pl.cdiv(n, tm)                  # ragged last block is masked by Pallas

    # VMEM budget: (tm, 32) f32 blocks are lane-padded to 128 lanes
    # -> tm * 512 B per buffer; 4 inputs + 1 output, double-buffered,
    # plus ~1 MiB for the (small) resident weights/biases.
    blk_bytes = tm * 128 * 4
    vmem_need = 2 * 5 * blk_bytes + (1 << 20)
    vmem_limit = int(min(max(vmem_need, 32 << 20), 56 << 20))

    row_spec = pl.BlockSpec((tm, f_in), lambda i: (i, 0))
    full = lambda shape: pl.BlockSpec(shape, lambda i: (0, 0))

    out = pl.pallas_call(
        gatev2_kernel,
        out_shape=jax.ShapeDtypeStruct((n, f_out), x_i.dtype),
        grid_spec=pltpu.PrefetchScalarGridSpec(
            num_scalar_prefetch=0,
            grid=(grid,),
            in_specs=[
                row_spec,                  # x_i
                row_spec,                  # x_j
                row_spec,                  # e_ij
                row_spec,                  # v
                full((f_in, hidden)),      # W1 (k half)
                full((f_in, hidden)),      # W1 (x_i half)
                full((1, hidden)),         # b1
                full((hidden, f_out)),     # W2
                full((1, f_out)),          # b2
            ],
            out_specs=pl.BlockSpec((tm, f_out), lambda i: (i, 0)),
        ),
        compiler_params=pltpu.CompilerParams(
            dimension_semantics=("parallel",),
            vmem_limit_bytes=vmem_limit,
        ),
    )(x_i, x_j, e_ij, v, w1_k, w1_i, b1_2d, w2, b2_2d)
    return out


def gatev2_reference(x_i, x_j, e_ij, v, w1, b1, w2, b2):
    k = x_j + e_ij + v
    h = jnp.concatenate([k, x_i], axis=-1) @ w1 + b1
    h = jnp.where(h > 0, h, 0.01 * h)
    return jnp.tanh(h @ w2 + b2)


if __name__ == "__main__":
    # Small shapes consistent with the module: in_size=32, k_s=1 (sum agg),
    # hidden=64, out_size=32.
    IN_SIZE, HIDDEN, OUT_SIZE = 32, 64, 32

    key = jax.random.PRNGKey(0)
    k_xi, k_xj, k_e, k_v, k_w1, k_b1, k_w2, k_b2 = jax.random.split(key, 8)

    w1 = jax.random.normal(k_w1, (2 * IN_SIZE, HIDDEN), jnp.float32) / jnp.sqrt(2 * IN_SIZE)
    b1 = jax.random.normal(k_b1, (HIDDEN,), jnp.float32) * 0.01
    w2 = jax.random.normal(k_w2, (HIDDEN, OUT_SIZE), jnp.float32) / jnp.sqrt(HIDDEN)
    b2 = jax.random.normal(k_b2, (OUT_SIZE,), jnp.float32) * 0.01

    ok = True
    # Cases: aligned single block; ragged 2-block grid (masked tail); ragged
    # multi-block grid.  All go through the no-pad / exact-out_shape path.
    for n, tm in [(128, 1024), (100, 64), (1000, 256)]:
        x_i = jax.random.normal(k_xi, (n, IN_SIZE), jnp.float32)
        x_j = jax.random.normal(k_xj, (n, IN_SIZE), jnp.float32)
        e_ij = jax.random.normal(k_e, (n, IN_SIZE), jnp.float32)
        v = jax.random.normal(k_v, (n, IN_SIZE), jnp.float32)

        out = gatev2_forward(x_i, x_j, e_ij, v, w1, b1, w2, b2, tm=tm)
        out = jax.block_until_ready(out)

        ref = gatev2_reference(x_i, x_j, e_ij, v, w1, b1, w2, b2)
        ok = ok and out.shape == (n, OUT_SIZE)
        ok = ok and bool(jnp.allclose(out, ref, atol=1e-5, rtol=1e-4))

    assert ok, "mismatch vs reference"
    print("KERNEL_OK")
</pallas_src>

<mosaic_0001>
module attributes {stable_mosaic.version = 11 : i64} {
  func.func @gatev2_kernel(%arg0: i32, %arg1: memref<128x32xf32, #tpu.memory_space<vmem>>, %arg2: memref<128x32xf32, #tpu.memory_space<vmem>>, %arg3: memref<128x32xf32, #tpu.memory_space<vmem>>, %arg4: memref<128x32xf32, #tpu.memory_space<vmem>>, %arg5: memref<32x64xf32, #tpu.memory_space<vmem>>, %arg6: memref<32x64xf32, #tpu.memory_space<vmem>>, %arg7: memref<1x64xf32, #tpu.memory_space<vmem>>, %arg8: memref<64x32xf32, #tpu.memory_space<vmem>>, %arg9: memref<1x32xf32, #tpu.memory_space<vmem>>, %arg10: memref<128x32xf32, #tpu.memory_space<vmem>>) attributes {dimension_semantics = [#tpu.dimension_semantics<parallel>], iteration_bounds = array<i64: 1>, scalar_prefetch = 0 : i64, scratch_operands = 0 : i64, tpu.core_type = #tpu.core_type<tc>, window_params = [{transform_indices = @transform_0, window_bounds = array<i64: 128, 32>}, {transform_indices = @transform_1, window_bounds = array<i64: 128, 32>}, {transform_indices = @transform_2, window_bounds = array<i64: 128, 32>}, {transform_indices = @transform_3, window_bounds = array<i64: 128, 32>}, {pipeline_mode = #tpu.pipeline_mode<synchronous>, transform_indices = @transform_4, window_bounds = array<i64: 32, 64>}, {pipeline_mode = #tpu.pipeline_mode<synchronous>, transform_indices = @transform_5, window_bounds = array<i64: 32, 64>}, {pipeline_mode = #tpu.pipeline_mode<synchronous>, transform_indices = @transform_6, window_bounds = array<i64: 1, 64>}, {pipeline_mode = #tpu.pipeline_mode<synchronous>, transform_indices = @transform_7, window_bounds = array<i64: 64, 32>}, {pipeline_mode = #tpu.pipeline_mode<synchronous>, transform_indices = @transform_8, window_bounds = array<i64: 1, 32>}, {transform_indices = @transform_9, window_bounds = array<i64: 128, 32>}]} {
    %c0 = arith.constant 0 : index
    %c0_0 = arith.constant 0 : index
    %0 = vector.load %arg2[%c0, %c0_0] : memref<128x32xf32, #tpu.memory_space<vmem>>, vector<128x32xf32>
    %c0_1 = arith.constant 0 : index
    %c0_2 = arith.constant 0 : index
    %1 = vector.load %arg3[%c0_1, %c0_2] : memref<128x32xf32, #tpu.memory_space<vmem>>, vector<128x32xf32>
    %2 = arith.addf %0, %1 : vector<128x32xf32>
    %c0_3 = arith.constant 0 : index
    %c0_4 = arith.constant 0 : index
    %3 = vector.load %arg4[%c0_3, %c0_4] : memref<128x32xf32, #tpu.memory_space<vmem>>, vector<128x32xf32>
    %4 = arith.addf %2, %3 : vector<128x32xf32>
    %c0_5 = arith.constant 0 : index
    %c0_6 = arith.constant 0 : index
    %5 = vector.load %arg5[%c0_5, %c0_6] : memref<32x64xf32, #tpu.memory_space<vmem>>, vector<32x64xf32>
    %cst = arith.constant dense<0.000000e+00> : vector<128x64xf32>
    %6 = tpu.matmul %4, %5, %cst {dimension_numbers = #tpu.dot_dimension_numbers<[1], [0], [0], [1], [0, 0, 1, 1], [], []>} : vector<128x32xf32>, vector<32x64xf32>, vector<128x64xf32> -> vector<128x64xf32>
    %c0_7 = arith.constant 0 : index
    %c0_8 = arith.constant 0 : index
    %7 = vector.load %arg1[%c0_7, %c0_8] : memref<128x32xf32, #tpu.memory_space<vmem>>, vector<128x32xf32>
    %c0_9 = arith.constant 0 : index
    %c0_10 = arith.constant 0 : index
    %8 = vector.load %arg6[%c0_9, %c0_10] : memref<32x64xf32, #tpu.memory_space<vmem>>, vector<32x64xf32>
    %cst_11 = arith.constant dense<0.000000e+00> : vector<128x64xf32>
    %9 = tpu.matmul %7, %8, %cst_11 {dimension_numbers = #tpu.dot_dimension_numbers<[1], [0], [0], [1], [0, 0, 1, 1], [], []>} : vector<128x32xf32>, vector<32x64xf32>, vector<128x64xf32> -> vector<128x64xf32>
    %10 = arith.addf %6, %9 : vector<128x64xf32>
    %c0_12 = arith.constant 0 : index
    %c0_13 = arith.constant 0 : index
    %11 = vector.load %arg7[%c0_12, %c0_13] : memref<1x64xf32, #tpu.memory_space<vmem>>, vector<1x64xf32>
    %12 = vector.broadcast %11 : vector<1x64xf32> to vector<128x64xf32>
    %13 = arith.addf %10, %12 : vector<128x64xf32>
    %cst_14 = arith.constant 0.000000e+00 : f32
    %14 = vector.broadcast %cst_14 : f32 to vector<128x64xf32>
    %15 = arith.cmpf ogt, %13, %14 : vector<128x64xf32>
    %cst_15 = arith.constant 0.00999999977 : f32
    %16 = vector.broadcast %cst_15 : f32 to vector<128x64xf32>
    %17 = arith.mulf %16, %13 : vector<128x64xf32>
    %18 = arith.select %15, %13, %17 : vector<128x64xi1>, vector<128x64xf32>
    %c0_16 = arith.constant 0 : index
    %c0_17 = arith.constant 0 : index
    %19 = vector.load %arg8[%c0_16, %c0_17] : memref<64x32xf32, #tpu.memory_space<vmem>>, vector<64x32xf32>
    %cst_18 = arith.constant dense<0.000000e+00> : vector<128x32xf32>
    %20 = tpu.matmul %18, %19, %cst_18 {dimension_numbers = #tpu.dot_dimension_numbers<[1], [0], [0], [1], [0, 0, 1, 1], [], []>} : vector<128x64xf32>, vector<64x32xf32>, vector<128x32xf32> -> vector<128x32xf32>
    %c0_19 = arith.constant 0 : index
    %c0_20 = arith.constant 0 : index
    %21 = vector.load %arg9[%c0_19, %c0_20] : memref<1x32xf32, #tpu.memory_space<vmem>>, vector<1x32xf32>
    %22 = vector.broadcast %21 : vector<1x32xf32> to vector<128x32xf32>
    %23 = arith.addf %20, %22 : vector<128x32xf32>
    %24 = math.tanh %23 : vector<128x32xf32>
    %c0_21 = arith.constant 0 : index
    %c0_22 = arith.constant 0 : index
    %25 = vector.load %arg10[%c0_21, %c0_22] : memref<128x32xf32, #tpu.memory_space<vmem>>, vector<128x32xf32>
    tpu.vector_store %arg10[%c0_21, %c0_22], %24 {strides = array<i32>} : memref<128x32xf32, #tpu.memory_space<vmem>>, vector<128x32xf32>,
    return
  }
  func.func @transform_0(%arg0: i32) -> (i32, i32) {
    %c0_i32 = arith.constant 0 : i32
    %c0_i32_0 = arith.constant 0 : i32
    return %arg0, %c0_i32 : i32, i32
  }
  func.func @transform_1(%arg0: i32) -> (i32, i32) {
    %c0_i32 = arith.constant 0 : i32
    %c0_i32_0 = arith.constant 0 : i32
    return %arg0, %c0_i32 : i32, i32
  }
  func.func @transform_2(%arg0: i32) -> (i32, i32) {
    %c0_i32 = arith.constant 0 : i32
    %c0_i32_0 = arith.constant 0 : i32
    return %arg0, %c0_i32 : i32, i32
  }
  func.func @transform_3(%arg0: i32) -> (i32, i32) {
    %c0_i32 = arith.constant 0 : i32
    %c0_i32_0 = arith.constant 0 : i32
    return %arg0, %c0_i32 : i32, i32
  }
  func.func @transform_4(%arg0: i32) -> (i32, i32) {
    %c0_i32 = arith.constant 0 : i32
    %c0_i32_0 = arith.constant 0 : i32
    %c0_i32_1 = arith.constant 0 : i32
    return %c0_i32, %c0_i32_0 : i32, i32
  }
  func.func @transform_5(%arg0: i32) -> (i32, i32) {
    %c0_i32 = arith.constant 0 : i32
    %c0_i32_0 = arith.constant 0 : i32
    %c0_i32_1 = arith.constant 0 : i32
    return %c0_i32, %c0_i32_0 : i32, i32
  }
  func.func @transform_6(%arg0: i32) -> (i32, i32) {
    %c0_i32 = arith.constant 0 : i32
    %c0_i32_0 = arith.constant 0 : i32
    %c0_i32_1 = arith.constant 0 : i32
    return %c0_i32, %c0_i32_0 : i32, i32
  }
  func.func @transform_7(%arg0: i32) -> (i32, i32) {
    %c0_i32 = arith.constant 0 : i32
    %c0_i32_0 = arith.constant 0 : i32
    %c0_i32_1 = arith.constant 0 : i32
    return %c0_i32, %c0_i32_0 : i32, i32
  }
  func.func @transform_8(%arg0: i32) -> (i32, i32) {
    %c0_i32 = arith.constant 0 : i32
    %c0_i32_0 = arith.constant 0 : i32
    %c0_i32_1 = arith.constant 0 : i32
    return %c0_i32, %c0_i32_0 : i32, i32
  }
  func.func @transform_9(%arg0: i32) -> (i32, i32) {
    %c0_i32 = arith.constant 0 : i32
    %c0_i32_0 = arith.constant 0 : i32
    return %arg0, %c0_i32 : i32, i32
  }
}

</mosaic_0001>

<llo_original>
// kernel: tpu_custom_call.1
$region0: #{tpu_custom_call.1}
  #allocation0 [shape = 'u32[]', space=smem, size = 0x4, offset = 0x4, fixed_abs, tag = 'smem constant byte address 0x4 - core index']
  #allocation1 [shape = 'u32[144,128]{1,0:T(1,128)}', space=vmem, size = 0x12000, scoped, tag = 'internal scratch']
  %s0 = inlined_call_operand.vmem [shape: f32[128,32], index: 0, kind: input, shape index: {}]
  %s1 = inlined_call_operand.vmem [shape: f32[128,32], index: 1, kind: input, shape index: {}]
  %s2 = inlined_call_operand.vmem [shape: f32[128,32], index: 2, kind: input, shape index: {}]
  %s3 = inlined_call_operand.vmem [shape: f32[128,32], index: 3, kind: input, shape index: {}]
  %s4 = inlined_call_operand.vmem [shape: f32[32,64], index: 4, kind: input, shape index: {}]
  %s5 = inlined_call_operand.vmem [shape: f32[32,64], index: 5, kind: input, shape index: {}]
  %s6 = inlined_call_operand.vmem [shape: f32[1,64], index: 6, kind: input, shape index: {}]
  %s7 = inlined_call_operand.vmem [shape: f32[64,32], index: 7, kind: input, shape index: {}]
  %s8 = inlined_call_operand.vmem [shape: f32[1,32], index: 8, kind: input, shape index: {}]
  %s9 = inlined_call_operand.vmem [shape: f32[128,32], index: 9, kind: output, shape index: {}]
  %s10 = sld [smem:[#allocation0]]
  $region46: #{tpu_custom_call.1} parent=0
    _
  %s12 = ssub.s32 1, %s10
  %s13 = scalar_select 0, %s12, %s10
  // Predicated region
  $region2: #{tpu_custom_call.1} parent=0 // pred_check
    _
  $region3: #{tpu_custom_call.1} parent=0 // pred_check_branch
    %15 = sbr.rel (0) target = $region5
  $region4: #{tpu_custom_call.1} parent=0 // pred_region
    _
  $region5: #{tpu_custom_call.1} parent=0 // pred_fallthru
    _
  // Predicated region
  $region6: #{tpu_custom_call.1} parent=0 // pred_check
    _
  $region7: #{tpu_custom_call.1} parent=0 // pred_check_branch
    %17 = sbr.rel (0) target = $region9
  $region8: #{tpu_custom_call.1} parent=0 // pred_region
    _
  $region9: #{tpu_custom_call.1} parent=0 // pred_fallthru
    _
  // Predicated region
  $region10: #{tpu_custom_call.1} parent=0 // pred_check
    _
  $region11: #{tpu_custom_call.1} parent=0 // pred_check_branch
    %19 = sbr.rel (0) target = $region13
  $region12: #{tpu_custom_call.1} parent=0 // pred_region
    _
  $region13: #{tpu_custom_call.1} parent=0 // pred_fallthru
    _
  // Predicated region
  $region14: #{tpu_custom_call.1} parent=0 // pred_check
    _
  $region15: #{tpu_custom_call.1} parent=0 // pred_check_branch
    %21 = sbr.rel (0) target = $region17
  $region16: #{tpu_custom_call.1} parent=0 // pred_region
    _
  $region17: #{tpu_custom_call.1} parent=0 // pred_fallthru
    _
  // Predicated region
  $region18: #{tpu_custom_call.1} parent=0 // pred_check
    _
  $region19: #{tpu_custom_call.1} parent=0 // pred_check_branch
    %23 = sbr.rel (0) target = $region21
  $region20: #{tpu_custom_call.1} parent=0 // pred_region
    _
  $region21: #{tpu_custom_call.1} parent=0 // pred_fallthru
    _
  // Predicated region
  $region22: #{tpu_custom_call.1} parent=0 // pred_check
    _
  $region23: #{tpu_custom_call.1} parent=0 // pred_check_branch
    %25 = sbr.rel (0) target = $region25
  $region24: #{tpu_custom_call.1} parent=0 // pred_region
    _
  $region25: #{tpu_custom_call.1} parent=0 // pred_fallthru
    _
  // Predicated region
  $region26: #{tpu_custom_call.1} parent=0 // pred_check
    _
  $region27: #{tpu_custom_call.1} parent=0 // pred_check_branch
    %27 = sbr.rel (0) target = $region29
  $region28: #{tpu_custom_call.1} parent=0 // pred_region
    _
  $region29: #{tpu_custom_call.1} parent=0 // pred_fallthru
    _
  // Predicated region
  $region30: #{tpu_custom_call.1} parent=0 // pred_check
    _
  $region31: #{tpu_custom_call.1} parent=0 // pred_check_branch
    %29 = sbr.rel (0) target = $region33
  $region32: #{tpu_custom_call.1} parent=0 // pred_region
    _
  $region33: #{tpu_custom_call.1} parent=0 // pred_fallthru
    _
  // Predicated region
  $region34: #{tpu_custom_call.1} parent=0 // pred_check
    _
  $region35: #{tpu_custom_call.1} parent=0 // pred_check_branch
    %31 = sbr.rel (0) target = $region37
  $region36: #{tpu_custom_call.1} parent=0 // pred_region
    _
  $region37: #{tpu_custom_call.1} parent=0 // pred_fallthru
    _
  %v32 = vld [vmem:[%s1] sm:$0xff]
  %v33 = vld [vmem:[%s1 + $0x8] sm:$0xff]
  %v34 = vld [vmem:[%s1 + $0x10] sm:$0xff]
  %v35 = vld [vmem:[%s1 + $0x18] sm:$0xff]
  %v36 = vld [vmem:[%s1 + $0x20] sm:$0xff]
  %v37 = vld [vmem:[%s1 + $0x28] sm:$0xff]
  %v38 = vld [vmem:[%s1 + $0x30] sm:$0xff]
  %v39 = vld [vmem:[%s1 + $0x38] sm:$0xff]
  %v40 = vld [vmem:[%s1 + $0x40] sm:$0xff]
  %v41 = vld [vmem:[%s1 + $0x48] sm:$0xff]
  %v42 = vld [vmem:[%s1 + $0x50] sm:$0xff]
  %v43 = vld [vmem:[%s1 + $0x58] sm:$0xff]
  %v44 = vld [vmem:[%s1 + $0x60] sm:$0xff]
  %v45 = vld [vmem:[%s1 + $0x68] sm:$0xff]
  %v46 = vld [vmem:[%s1 + $0x70] sm:$0xff]
  %v47 = vld [vmem:[%s1 + $0x78] sm:$0xff]
  %v48 = vld [vmem:[%s2] sm:$0xff]
  %v49 = vld [vmem:[%s2 + $0x8] sm:$0xff]
  %v50 = vld [vmem:[%s2 + $0x10] sm:$0xff]
  %v51 = vld [vmem:[%s2 + $0x18] sm:$0xff]
  %v52 = vld [vmem:[%s2 + $0x20] sm:$0xff]
  %v53 = vld [vmem:[%s2 + $0x28] sm:$0xff]
  %v54 = vld [vmem:[%s2 + $0x30] sm:$0xff]
  %v55 = vld [vmem:[%s2 + $0x38] sm:$0xff]
  %v56 = vld [vmem:[%s2 + $0x40] sm:$0xff]
  %v57 = vld [vmem:[%s2 + $0x48] sm:$0xff]
  %v58 = vld [vmem:[%s2 + $0x50] sm:$0xff]
  %v59 = vld [vmem:[%s2 + $0x58] sm:$0xff]
  %v60 = vld [vmem:[%s2 + $0x60] sm:$0xff]
  %v61 = vld [vmem:[%s2 + $0x68] sm:$0xff]
  %v62 = vld [vmem:[%s2 + $0x70] sm:$0xff]
  %v63 = vld [vmem:[%s2 + $0x78] sm:$0xff]
  %v64 = vadd.f32 %v32, %v48
  %v65 = vadd.f32 %v33, %v49
  %v66 = vadd.f32 %v34, %v50
  %v67 = vadd.f32 %v35, %v51
  %v68 = vadd.f32 %v36, %v52
  %v69 = vadd.f32 %v37, %v53
  %v70 = vadd.f32 %v38, %v54
  %v71 = vadd.f32 %v39, %v55
  %v72 = vadd.f32 %v40, %v56
  %v73 = vadd.f32 %v41, %v57
  %v74 = vadd.f32 %v42, %v58
  %v75 = vadd.f32 %v43, %v59
  %v76 = vadd.f32 %v44, %v60
  %v77 = vadd.f32 %v45, %v61
  %v78 = vadd.f32 %v46, %v62
  %v79 = vadd.f32 %v47, %v63
  %v80 = vld [vmem:[%s3] sm:$0xff]
  %v81 = vld [vmem:[%s3 + $0x8] sm:$0xff]
  %v82 = vld [vmem:[%s3 + $0x10] sm:$0xff]
  %v83 = vld [vmem:[%s3 + $0x18] sm:$0xff]
  %v84 = vld [vmem:[%s3 + $0x20] sm:$0xff]
  %v85 = vld [vmem:[%s3 + $0x28] sm:$0xff]
  %v86 = vld [vmem:[%s3 + $0x30] sm:$0xff]
  %v87 = vld [vmem:[%s3 + $0x38] sm:$0xff]
  %v88 = vld [vmem:[%s3 + $0x40] sm:$0xff]
  %v89 = vld [vmem:[%s3 + $0x48] sm:$0xff]
  %v90 = vld [vmem:[%s3 + $0x50] sm:$0xff]
  %v91 = vld [vmem:[%s3 + $0x58] sm:$0xff]
  %v92 = vld [vmem:[%s3 + $0x60] sm:$0xff]
  %v93 = vld [vmem:[%s3 + $0x68] sm:$0xff]
  %v94 = vld [vmem:[%s3 + $0x70] sm:$0xff]
  %v95 = vld [vmem:[%s3 + $0x78] sm:$0xff]
  %v96 = vadd.f32 %v64, %v80
  %v97 = vadd.f32 %v65, %v81
  %v98 = vadd.f32 %v66, %v82
  %v99 = vadd.f32 %v67, %v83
  %v100 = vadd.f32 %v68, %v84
  %v101 = vadd.f32 %v69, %v85
  %v102 = vadd.f32 %v70, %v86
  %v103 = vadd.f32 %v71, %v87
  %v104 = vadd.f32 %v72, %v88
  %v105 = vadd.f32 %v73, %v89
  %v106 = vadd.f32 %v74, %v90
  %v107 = vadd.f32 %v75, %v91
  %v108 = vadd.f32 %v76, %v92
  %v109 = vadd.f32 %v77, %v93
  %v110 = vadd.f32 %v78, %v94
  %v111 = vadd.f32 %v79, %v95
  %v112 = vld [vmem:[%s4] sm:$0xff]
  %v113 = vld [vmem:[%s4 + $0x8] sm:$0xff]
  %v114 = vld [vmem:[%s4 + $0x10] sm:$0xff]
  %v115 = vld [vmem:[%s4 + $0x18] sm:$0xff]
  %v116 = vld [vmem:[%s0] sm:$0xff]
  %v117 = vld [vmem:[%s0 + $0x8] sm:$0xff]
  %v118 = vld [vmem:[%s0 + $0x10] sm:$0xff]
  %v119 = vld [vmem:[%s0 + $0x18] sm:$0xff]
  %v120 = vld [vmem:[%s0 + $0x20] sm:$0xff]
  %v121 = vld [vmem:[%s0 + $0x28] sm:$0xff]
  %v122 = vld [vmem:[%s0 + $0x30] sm:$0xff]
  %v123 = vld [vmem:[%s0 + $0x38] sm:$0xff]
  %v124 = vld [vmem:[%s0 + $0x40] sm:$0xff]
  %v125 = vld [vmem:[%s0 + $0x48] sm:$0xff]
  %v126 = vld [vmem:[%s0 + $0x50] sm:$0xff]
  %v127 = vld [vmem:[%s0 + $0x58] sm:$0xff]
  %v128 = vld [vmem:[%s0 + $0x60] sm:$0xff]
  %v129 = vld [vmem:[%s0 + $0x68] sm:$0xff]
  %v130 = vld [vmem:[%s0 + $0x70] sm:$0xff]
  %v131 = vld [vmem:[%s0 + $0x78] sm:$0xff]
  %v132 = vld [vmem:[%s5] sm:$0xff]
  %v133 = vld [vmem:[%s5 + $0x8] sm:$0xff]
  %v134 = vld [vmem:[%s5 + $0x10] sm:$0xff]
  %v135 = vld [vmem:[%s5 + $0x18] sm:$0xff]
  %vm136 = vcmask 261120
  %v138 = vsel %vm136, %v116, 0
  %v141 = vsel %vm136, %v117, 0
  %v144 = vsel %vm136, %v118, 0
  %v147 = vsel %vm136, %v119, 0
  %v150 = vsel %vm136, %v120, 0
  %v153 = vsel %vm136, %v121, 0
  %v156 = vsel %vm136, %v122, 0
  %v159 = vsel %vm136, %v123, 0
  %v162 = vsel %vm136, %v124, 0
  %v165 = vsel %vm136, %v125, 0
  %v168 = vsel %vm136, %v126, 0
  %v171 = vsel %vm136, %v127, 0
  %v174 = vsel %vm136, %v128, 0
  %v177 = vsel %vm136, %v129, 0
  %v180 = vsel %vm136, %v130, 0
  %v183 = vsel %vm136, %v131, 0
  %185 = vmatprep.subr.mxu0 0.0
  %186 = vmatpush1.msra.mxu0 %v132
  %187 = vmatprep.subr.mxu0 0.0
  %188 = vmatpush1.msra.mxu0 %v133
  %189 = vmatprep.subr.mxu0 0.0
  %190 = vmatpush1.msra.mxu0 %v134
  %191 = vmatprep.subr.mxu0 0.0
  %192 = vmatpush1.msra.mxu0 %v135
  %193 = vmatprep.subr.mxu0 0.0
  %194 = vmatpush1.msra.mxu0 0.0
  %195 = vmatprep.subr.mxu0 0.0
  %196 = vmatpush1.msra.mxu0 0.0
  %197 = vmatprep.subr.mxu0 0.0
  %198 = vmatpush1.msra.mxu0 0.0
  %199 = vmatprep.subr.mxu0 0.0
  %200 = vmatpush1.msra.mxu0 0.0
  %201 = vmatprep.subr.mxu0 0.0
  %202 = vmatpush1.msra.mxu0 0.0
  %203 = vmatprep.subr.mxu0 0.0
  %204 = vmatpush1.msra.mxu0 0.0
  %205 = vmatprep.subr.mxu0 0.0
  %206 = vmatpush1.msra.mxu0 0.0
  %207 = vmatprep.subr.mxu0 0.0
  %208 = vmatpush1.msra.mxu0 0.0
  %209 = vmatprep.subr.mxu0 0.0
  %210 = vmatpush1.msra.mxu0 0.0
  %211 = vmatprep.subr.mxu0 0.0
  %212 = vmatpush1.msra.mxu0 0.0
  %213 = vmatprep.subr.mxu0 0.0
  %214 = vmatpush1.msra.mxu0 0.0
  %215 = vmatprep.subr.mxu0 0.0
  %216 = vmatpush1.msra.mxu0 0.0
  %217 = vmatprep.subr.mxu0 0.0
  %218 = vmatpush1.msra.mxu0 0.0
  %219 = vmatprep.subr.mxu0 0.0
  %220 = vmatpush1.msra.mxu0 0.0
  %221 = vmatprep.subr.mxu0 0.0
  %222 = vmatpush1.msra.mxu0 0.0
  %223 = vmatprep.subr.mxu0 0.0
  %224 = vmatpush1.msra.mxu0 0.0
  %225 = vmatprep.subr.mxu0 0.0
  %226 = vmatpush1.msra.mxu0 0.0
  %227 = vmatprep.subr.mxu0 0.0
  %228 = vmatpush1.msra.mxu0 0.0
  %229 = vmatprep.subr.mxu0 0.0
  %230 = vmatpush1.msra.mxu0 0.0
  %231 = vmatprep.subr.mxu0 0.0
  %232 = vmatpush1.msra.mxu0 0.0
  %233 = vmatprep.subr.mxu0 0.0
  %234 = vmatpush1.msra.mxu0 0.0
  %235 = vmatprep.subr.mxu0 0.0
  %236 = vmatpush1.msra.mxu0 0.0
  %237 = vmatprep.subr.mxu0 0.0
  %238 = vmatpush1.msra.mxu0 0.0
  %239 = vmatprep.subr.mxu0 0.0
  %240 = vmatpush1.msra.mxu0 0.0
  %241 = vmatprep.subr.mxu0 0.0
  %242 = vmatpush1.msra.mxu0 0.0
  %243 = vmatprep.subr.mxu0 0.0
  %244 = vmatpush1.msra.mxu0 0.0
  %245 = vmatprep.subr.mxu0 0.0
  %246 = vmatpush1.msra.mxu0 0.0
  %247 = vmatprep.subr.mxu0 0.0
  %248 = vmatpush1.msra.mxu0 0.0
  %249 = vmatprep.mubr.f32.mxu0 0.0
  %250 = vmatmul.mubr.f32.gmra.mrb[0].mxu0 %v138
  %v251 = vpop.f32.mrb[0].mxu0
  %v252 = vadd.f32 0.0, %v251
  %v253 = vpop.f32.mrb[0].mxu0
  %254 = vmatprep.mubr.f32.mxu0 0.0
  %255 = vmatmul.mubr.f32.gmra.mrb[0].mxu0 %v141
  %v256 = vpop.f32.mrb[0].mxu0
  %v257 = vadd.f32 0.0, %v256
  %v258 = vpop.f32.mrb[0].mxu0
  %259 = vmatprep.mubr.f32.mxu0 0.0
  %260 = vmatmul.mubr.f32.gmra.mrb[0].mxu0 %v144
  %v261 = vpop.f32.mrb[0].mxu0
  %v262 = vadd.f32 0.0, %v261
  %v263 = vpop.f32.mrb[0].mxu0
  %264 = vmatprep.mubr.f32.mxu0 0.0
  %265 = vmatmul.mubr.f32.gmra.mrb[0].mxu0 %v147
  %v266 = vpop.f32.mrb[0].mxu0
  %v267 = vadd.f32 0.0, %v266
  %v268 = vpop.f32.mrb[0].mxu0
  %269 = vmatprep.mubr.f32.mxu0 0.0
  %270 = vmatmul.mubr.f32.gmra.mrb[0].mxu0 %v150
  %v271 = vpop.f32.mrb[0].mxu0
  %v272 = vadd.f32 0.0, %v271
  %v273 = vpop.f32.mrb[0].mxu0
  %274 = vmatprep.mubr.f32.mxu0 0.0
  %275 = vmatmul.mubr.f32.gmra.mrb[0].mxu0 %v153
  %v276 = vpop.f32.mrb[0].mxu0
  %v277 = vadd.f32 0.0, %v276
  %v278 = vpop.f32.mrb[0].mxu0
  %279 = vmatprep.mubr.f32.mxu0 0.0
  %280 = vmatmul.mubr.f32.gmra.mrb[0].mxu0 %v156
  %v281 = vpop.f32.mrb[0].mxu0
  %v282 = vadd.f32 0.0, %v281
  %v283 = vpop.f32.mrb[0].mxu0
  %284 = vmatprep.mubr.f32.mxu0 0.0
  %285 = vmatmul.mubr.f32.gmra.mrb[0].mxu0 %v159
  %v286 = vpop.f32.mrb[0].mxu0
  %v287 = vadd.f32 0.0, %v286
  %v288 = vpop.f32.mrb[0].mxu0
  %289 = vmatprep.mubr.f32.mxu0 0.0
  %290 = vmatmul.mubr.f32.gmra.mrb[0].mxu0 %v162
  %v291 = vpop.f32.mrb[0].mxu0
  %v292 = vadd.f32 0.0, %v291
  %v293 = vpop.f32.mrb[0].mxu0
  %294 = vmatprep.mubr.f32.mxu0 0.0
  %295 = vmatmul.mubr.f32.gmra.mrb[0].mxu0 %v165
  %v296 = vpop.f32.mrb[0].mxu0
  %v297 = vadd.f32 0.0, %v296
  %v298 = vpop.f32.mrb[0].mxu0
  %299 = vmatprep.mubr.f32.mxu0 0.0
  %300 = vmatmul.mubr.f32.gmra.mrb[0].mxu0 %v168
  %v301 = vpop.f32.mrb[0].mxu0
  %v302 = vadd.f32 0.0, %v301
  %v303 = vpop.f32.mrb[0].mxu0
  %304 = vmatprep.mubr.f32.mxu0 0.0
  %305 = vmatmul.mubr.f32.gmra.mrb[0].mxu0 %v171
  %v306 = vpop.f32.mrb[0].mxu0
  %v307 = vadd.f32 0.0, %v306
  %v308 = vpop.f32.mrb[0].mxu0
  %309 = vmatprep.mubr.f32.mxu0 0.0
  %310 = vmatmul.mubr.f32.gmra.mrb[0].mxu0 %v174
  %v311 = vpop.f32.mrb[0].mxu0
  %v312 = vadd.f32 0.0, %v311
  %v313 = vpop.f32.mrb[0].mxu0
  %314 = vmatprep.mubr.f32.mxu0 0.0
  %315 = vmatmul.mubr.f32.gmra.mrb[0].mxu0 %v177
  %v316 = vpop.f32.mrb[0].mxu0
  %v317 = vadd.f32 0.0, %v316
  %v318 = vpop.f32.mrb[0].mxu0
  %319 = vmatprep.mubr.f32.mxu0 0.0
  %320 = vmatmul.mubr.f32.gmra.mrb[0].mxu0 %v180
  %v321 = vpop.f32.mrb[0].mxu0
  %v322 = vadd.f32 0.0, %v321
  %v323 = vpop.f32.mrb[0].mxu0
  %324 = vmatprep.mubr.f32.mxu0 0.0
  %325 = vmatmul.mubr.f32.gmra.mrb[0].mxu0 %v183
  %v326 = vpop.f32.mrb[0].mxu0
  %v327 = vadd.f32 0.0, %v326
  %v328 = vpop.f32.mrb[0].mxu0
  %329 = vdwg.mxu0
  %v331 = vsel %vm136, %v96, 0
  %v334 = vsel %vm136, %v97, 0
  %v337 = vsel %vm136, %v98, 0
  %v340 = vsel %vm136, %v99, 0
  %v343 = vsel %vm136, %v100, 0
  %v346 = vsel %vm136, %v101, 0
  %v349 = vsel %vm136, %v102, 0
  %v352 = vsel %vm136, %v103, 0
  %v355 = vsel %vm136, %v104, 0
  %v358 = vsel %vm136, %v105, 0
  %v361 = vsel %vm136, %v106, 0
  %v364 = vsel %vm136, %v107, 0
  %v367 = vsel %vm136, %v108, 0
  %v370 = vsel %vm136, %v109, 0
  %v373 = vsel %vm136, %v110, 0
  %v376 = vsel %vm136, %v111, 0
  %378 = vmatprep.subr.mxu0 0.0
  %379 = vmatpush1.msra.mxu0 %v112
  %380 = vmatprep.subr.mxu0 0.0
  %381 = vmatpush1.msra.mxu0 %v113
  %382 = vmatprep.subr.mxu0 0.0
  %383 = vmatpush1.msra.mxu0 %v114
  %384 = vmatprep.subr.mxu0 0.0
  %385 = vmatpush1.msra.mxu0 %v115
  %386 = vmatprep.subr.mxu0 0.0
  %387 = vmatpush1.msra.mxu0 0.0
  %388 = vmatprep.subr.mxu0 0.0
  %389 = vmatpush1.msra.mxu0 0.0
  %390 = vmatprep.subr.mxu0 0.0
  %391 = vmatpush1.msra.mxu0 0.0
  %392 = vmatprep.subr.mxu0 0.0
  %393 = vmatpush1.msra.mxu0 0.0
  %394 = vmatprep.subr.mxu0 0.0
  %395 = vmatpush1.msra.mxu0 0.0
  %396 = vmatprep.subr.mxu0 0.0
  %397 = vmatpush1.msra.mxu0 0.0
  %398 = vmatprep.subr.mxu0 0.0
  %399 = vmatpush1.msra.mxu0 0.0
  %400 = vmatprep.subr.mxu0 0.0
  %401 = vmatpush1.msra.mxu0 0.0
  %402 = vmatprep.subr.mxu0 0.0
  %403 = vmatpush1.msra.mxu0 0.0
  %404 = vmatprep.subr.mxu0 0.0
  %405 = vmatpush1.msra.mxu0 0.0
  %406 = vmatprep.subr.mxu0 0.0
  %407 = vmatpush1.msra.mxu0 0.0
  %408 = vmatprep.subr.mxu0 0.0
  %409 = vmatpush1.msra.mxu0 0.0
  %410 = vmatprep.subr.mxu0 0.0
  %411 = vmatpush1.msra.mxu0 0.0
  %412 = vmatprep.subr.mxu0 0.0
  %413 = vmatpush1.msra.mxu0 0.0
  %414 = vmatprep.subr.mxu0 0.0
  %415 = vmatpush1.msra.mxu0 0.0
  %416 = vmatprep.subr.mxu0 0.0
  %417 = vmatpush1.msra.mxu0 0.0
  %418 = vmatprep.subr.mxu0 0.0
  %419 = vmatpush1.msra.mxu0 0.0
  %420 = vmatprep.subr.mxu0 0.0
  %421 = vmatpush1.msra.mxu0 0.0
  %422 = vmatprep.subr.mxu0 0.0
  %423 = vmatpush1.msra.mxu0 0.0
  %424 = vmatprep.subr.mxu0 0.0
  %425 = vmatpush1.msra.mxu0 0.0
  %426 = vmatprep.subr.mxu0 0.0
  %427 = vmatpush1.msra.mxu0 0.0
  %428 = vmatprep.subr.mxu0 0.0
  %429 = vmatpush1.msra.mxu0 0.0
  %430 = vmatprep.subr.mxu0 0.0
  %431 = vmatpush1.msra.mxu0 0.0
  %432 = vmatprep.subr.mxu0 0.0
  %433 = vmatpush1.msra.mxu0 0.0
  %434 = vmatprep.subr.mxu0 0.0
  %435 = vmatpush1.msra.mxu0 0.0
  %436 = vmatprep.subr.mxu0 0.0
  %437 = vmatpush1.msra.mxu0 0.0
  %438 = vmatprep.subr.mxu0 0.0
  %439 = vmatpush1.msra.mxu0 0.0
  %440 = vmatprep.subr.mxu0 0.0
  %441 = vmatpush1.msra.mxu0 0.0
  %442 = vmatprep.mubr.f32.mxu0 0.0
  %443 = vmatmul.mubr.f32.gmra.mrb[0].mxu0 %v331
  %v444 = vpop.f32.mrb[0].mxu0
  %v445 = vadd.f32 %v252, %v444
  %v446 = vpop.f32.mrb[0].mxu0
  %447 = vmatprep.mubr.f32.mxu0 0.0
  %448 = vmatmul.mubr.f32.gmra.mrb[0].mxu0 %v334
  %v449 = vpop.f32.mrb[0].mxu0
  %v450 = vadd.f32 %v257, %v449
  %v451 = vpop.f32.mrb[0].mxu0
  %452 = vmatprep.mubr.f32.mxu0 0.0
  %453 = vmatmul.mubr.f32.gmra.mrb[0].mxu0 %v337
  %v454 = vpop.f32.mrb[0].mxu0
  %v455 = vadd.f32 %v262, %v454
  %v456 = vpop.f32.mrb[0].mxu0
  %457 = vmatprep.mubr.f32.mxu0 0.0
  %458 = vmatmul.mubr.f32.gmra.mrb[0].mxu0 %v340
  %v459 = vpop.f32.mrb[0].mxu0
  %v460 = vadd.f32 %v267, %v459
  %v461 = vpop.f32.mrb[0].mxu0
  %462 = vmatprep.mubr.f32.mxu0 0.0
  %463 = vmatmul.mubr.f32.gmra.mrb[0].mxu0 %v343
  %v464 = vpop.f32.mrb[0].mxu0
  %v465 = vadd.f32 %v272, %v464
  %v466 = vpop.f32.mrb[0].mxu0
  %467 = vmatprep.mubr.f32.mxu0 0.0
  %468 = vmatmul.mubr.f32.gmra.mrb[0].mxu0 %v346
  %v469 = vpop.f32.mrb[0].mxu0
  %v470 = vadd.f32 %v277, %v469
  %v471 = vpop.f32.mrb[0].mxu0
  %472 = vmatprep.mubr.f32.mxu0 0.0
  %473 = vmatmul.mubr.f32.gmra.mrb[0].mxu0 %v349
  %v474 = vpop.f32.mrb[0].mxu0
  %v475 = vadd.f32 %v282, %v474
  %v476 = vpop.f32.mrb[0].mxu0
  %477 = vmatprep.mubr.f32.mxu0 0.0
  %478 = vmatmul.mubr.f32.gmra.mrb[0].mxu0 %v352
  %v479 = vpop.f32.mrb[0].mxu0
  %v480 = vadd.f32 %v287, %v479
  %v481 = vpop.f32.mrb[0].mxu0
  %482 = vmatprep.mubr.f32.mxu0 0.0
  %483 = vmatmul.mubr.f32.gmra.mrb[0].mxu0 %v355
  %v484 = vpop.f32.mrb[0].mxu0
  %v485 = vadd.f32 %v292, %v484
  %v486 = vpop.f32.mrb[0].mxu0
  %487 = vmatprep.mubr.f32.mxu0 0.0
  %488 = vmatmul.mubr.f32.gmra.mrb[0].mxu0 %v358
  %v489 = vpop.f32.mrb[0].mxu0
  %v490 = vadd.f32 %v297, %v489
  %v491 = vpop.f32.mrb[0].mxu0
  %492 = vmatprep.mubr.f32.mxu0 0.0
  %493 = vmatmul.mubr.f32.gmra.mrb[0].mxu0 %v361
  %v494 = vpop.f32.mrb[0].mxu0
  %v495 = vadd.f32 %v302, %v494
  %v496 = vpop.f32.mrb[0].mxu0
  %497 = vmatprep.mubr.f32.mxu0 0.0
  %498 = vmatmul.mubr.f32.gmra.mrb[0].mxu0 %v364
  %v499 = vpop.f32.mrb[0].mxu0
  %v500 = vadd.f32 %v307, %v499
  %v501 = vpop.f32.mrb[0].mxu0
  %502 = vmatprep.mubr.f32.mxu0 0.0
  %503 = vmatmul.mubr.f32.gmra.mrb[0].mxu0 %v367
  %v504 = vpop.f32.mrb[0].mxu0
  %v505 = vadd.f32 %v312, %v504
  %v506 = vpop.f32.mrb[0].mxu0
  %507 = vmatprep.mubr.f32.mxu0 0.0
  %508 = vmatmul.mubr.f32.gmra.mrb[0].mxu0 %v370
  %v509 = vpop.f32.mrb[0].mxu0
  %v510 = vadd.f32 %v317, %v509
  %v511 = vpop.f32.mrb[0].mxu0
  %512 = vmatprep.mubr.f32.mxu0 0.0
  %513 = vmatmul.mubr.f32.gmra.mrb[0].mxu0 %v373
  %v514 = vpop.f32.mrb[0].mxu0
  %v515 = vadd.f32 %v322, %v514
  %v516 = vpop.f32.mrb[0].mxu0
  %517 = vmatprep.mubr.f32.mxu0 0.0
  %518 = vmatmul.mubr.f32.gmra.mrb[0].mxu0 %v376
  %v519 = vpop.f32.mrb[0].mxu0
  %v520 = vadd.f32 %v327, %v519
  %v521 = vpop.f32.mrb[0].mxu0
  %522 = vdwg.mxu0
  %v523 = vld [vmem:[%s6] sm:$0x1]
  %v525 = vlaneseq
  %v526 = vshrl.u32 %v525, 7
  %v527 = vsub.s32 0, %v526
  %v528 = vrot.slane %v523, %v527
  %v530 = vadd.f32 %v445, %v528
  %v531 = vadd.f32 %v450, %v528
  %v532 = vadd.f32 %v455, %v528
  %v533 = vadd.f32 %v460, %v528
  %v534 = vadd.f32 %v465, %v528
  %v535 = vadd.f32 %v470, %v528
  %v536 = vadd.f32 %v475, %v528
  %v537 = vadd.f32 %v480, %v528
  %v538 = vadd.f32 %v485, %v528
  %v539 = vadd.f32 %v490, %v528
  %v540 = vadd.f32 %v495, %v528
  %v541 = vadd.f32 %v500, %v528
  %v542 = vadd.f32 %v505, %v528
  %v543 = vadd.f32 %v510, %v528
  %v544 = vadd.f32 %v515, %v528
  %v545 = vadd.f32 %v520, %v528
  %vm546 = vcmp.gt.f32.partialorder %v530, 0.0
  %vm547 = vcmp.gt.f32.partialorder %v531, 0.0
  %vm548 = vcmp.gt.f32.partialorder %v532, 0.0
  %vm549 = vcmp.gt.f32.partialorder %v533, 0.0
  %vm550 = vcmp.gt.f32.partialorder %v534, 0.0
  %vm551 = vcmp.gt.f32.partialorder %v535, 0.0
  %vm552 = vcmp.gt.f32.partialorder %v536, 0.0
  %vm553 = vcmp.gt.f32.partialorder %v537, 0.0
  %vm554 = vcmp.gt.f32.partialorder %v538, 0.0
  %vm555 = vcmp.gt.f32.partialorder %v539, 0.0
  %vm556 = vcmp.gt.f32.partialorder %v540, 0.0
  %vm557 = vcmp.gt.f32.partialorder %v541, 0.0
  %vm558 = vcmp.gt.f32.partialorder %v542, 0.0
  %vm559 = vcmp.gt.f32.partialorder %v543, 0.0
  %vm560 = vcmp.gt.f32.partialorder %v544, 0.0
  %vm561 = vcmp.gt.f32.partialorder %v545, 0.0
  %v562 = vmul.f32 %v530, 0.01
  %v563 = vmul.f32 %v531, 0.01
  %v564 = vmul.f32 %v532, 0.01
  %v565 = vmul.f32 %v533, 0.01
  %v566 = vmul.f32 %v534, 0.01
  %v567 = vmul.f32 %v535, 0.01
  %v568 = vmul.f32 %v536, 0.01
  %v569 = vmul.f32 %v537, 0.01
  %v570 = vmul.f32 %v538, 0.01
  %v571 = vmul.f32 %v539, 0.01
  %v572 = vmul.f32 %v540, 0.01
  %v573 = vmul.f32 %v541, 0.01
  %v574 = vmul.f32 %v542, 0.01
  %v575 = vmul.f32 %v543, 0.01
  %v576 = vmul.f32 %v544, 0.01
  %v577 = vmul.f32 %v545, 0.01
  %v578 = vsel %vm546, %v530, %v562
  %v579 = vsel %vm547, %v531, %v563
  %v580 = vsel %vm548, %v532, %v564
  %v581 = vsel %vm549, %v533, %v565
  %v582 = vsel %vm550, %v534, %v566
  %v583 = vsel %vm551, %v535, %v567
  %v584 = vsel %vm552, %v536, %v568
  %v585 = vsel %vm553, %v537, %v569
  %v586 = vsel %vm554, %v538, %v570
  %v587 = vsel %vm555, %v539, %v571
  %v588 = vsel %vm556, %v540, %v572
  %v589 = vsel %vm557, %v541, %v573
  %v590 = vsel %vm558, %v542, %v574
  %v591 = vsel %vm559, %v543, %v575
  %v592 = vsel %vm560, %v544, %v576
  %v593 = vsel %vm561, %v545, %v577
  %v594 = vld [vmem:[%s7] sm:$0xff]
  %v595 = vld [vmem:[%s7 + $0x8] sm:$0xff]
  %v596 = vld [vmem:[%s7 + $0x10] sm:$0xff]
  %v597 = vld [vmem:[%s7 + $0x18] sm:$0xff]
  %v598 = vld [vmem:[%s7 + $0x20] sm:$0xff]
  %v599 = vld [vmem:[%s7 + $0x28] sm:$0xff]
  %v600 = vld [vmem:[%s7 + $0x30] sm:$0xff]
  %v601 = vld [vmem:[%s7 + $0x38] sm:$0xff]
  %v602 = vld [vmem:[%s8] sm:$0x1]
  %v604 = vlaneseq
  %v605 = vshrl.u32 %v604, 7
  %v606 = vsub.s32 0, %v605
  %v607 = vrot.slane %v602, %v606
  %vm609 = vcmask 523264
  %v611 = vsel %vm609, %v578, 0
  %v614 = vsel %vm609, %v579, 0
  %v617 = vsel %vm609, %v580, 0
  %v620 = vsel %vm609, %v581, 0
  %v623 = vsel %vm609, %v582, 0
  %v626 = vsel %vm609, %v583, 0
  %v629 = vsel %vm609, %v584, 0
  %v632 = vsel %vm609, %v585, 0
  %v635 = vsel %vm609, %v586, 0
  %v638 = vsel %vm609, %v587, 0
  %v641 = vsel %vm609, %v588, 0
  %v644 = vsel %vm609, %v589, 0
  %v647 = vsel %vm609, %v590, 0
  %v650 = vsel %vm609, %v591, 0
  %v653 = vsel %vm609, %v592, 0
  %v656 = vsel %vm609, %v593, 0
  %658 = vmatprep.subr.mxu0 0.0
  %659 = vmatpush1.msra.mxu0 %v594
  %660 = vmatprep.subr.mxu0 0.0
  %661 = vmatpush1.msra.mxu0 %v595
  %662 = vmatprep.subr.mxu0 0.0
  %663 = vmatpush1.msra.mxu0 %v596
  %664 = vmatprep.subr.mxu0 0.0
  %665 = vmatpush1.msra.mxu0 %v597
  %666 = vmatprep.subr.mxu0 0.0
  %667 = vmatpush1.msra.mxu0 %v598
  %668 = vmatprep.subr.mxu0 0.0
  %669 = vmatpush1.msra.mxu0 %v599
  %670 = vmatprep.subr.mxu0 0.0
  %671 = vmatpush1.msra.mxu0 %v600
  %672 = vmatprep.subr.mxu0 0.0
  %673 = vmatpush1.msra.mxu0 %v601
  %674 = vmatprep.subr.mxu0 0.0
  %675 = vmatpush1.msra.mxu0 0.0
  %676 = vmatprep.subr.mxu0 0.0
  %677 = vmatpush1.msra.mxu0 0.0
  %678 = vmatprep.subr.mxu0 0.0
  %679 = vmatpush1.msra.mxu0 0.0
  %680 = vmatprep.subr.mxu0 0.0
  %681 = vmatpush1.msra.mxu0 0.0
  %682 = vmatprep.subr.mxu0 0.0
  %683 = vmatpush1.msra.mxu0 0.0
  %684 = vmatprep.subr.mxu0 0.0
  %685 = vmatpush1.msra.mxu0 0.0
  %686 = vmatprep.subr.mxu0 0.0
  %687 = vmatpush1.msra.mxu0 0.0
  %688 = vmatprep.subr.mxu0 0.0
  %689 = vmatpush1.msra.mxu0 0.0
  %690 = vmatprep.subr.mxu0 0.0
  %691 = vmatpush1.msra.mxu0 0.0
  %692 = vmatprep.subr.mxu0 0.0
  %693 = vmatpush1.msra.mxu0 0.0
  %694 = vmatprep.subr.mxu0 0.0
  %695 = vmatpush1.msra.mxu0 0.0
  %696 = vmatprep.subr.mxu0 0.0
  %697 = vmatpush1.msra.mxu0 0.0
  %698 = vmatprep.subr.mxu0 0.0
  %699 = vmatpush1.msra.mxu0 0.0
  %700 = vmatprep.subr.mxu0 0.0
  %701 = vmatpush1.msra.mxu0 0.0
  %702 = vmatprep.subr.mxu0 0.0
  %703 = vmatpush1.msra.mxu0 0.0
  %704 = vmatprep.subr.mxu0 0.0
  %705 = vmatpush1.msra.mxu0 0.0
  %706 = vmatprep.subr.mxu0 0.0
  %707 = vmatpush1.msra.mxu0 0.0
  %708 = vmatprep.subr.mxu0 0.0
  %709 = vmatpush1.msra.mxu0 0.0
  %710 = vmatprep.subr.mxu0 0.0
  %711 = vmatpush1.msra.mxu0 0.0
  %712 = vmatprep.subr.mxu0 0.0
  %713 = vmatpush1.msra.mxu0 0.0
  %714 = vmatprep.subr.mxu0 0.0
  %715 = vmatpush1.msra.mxu0 0.0
  %716 = vmatprep.subr.mxu0 0.0
  %717 = vmatpush1.msra.mxu0 0.0
  %718 = vmatprep.subr.mxu0 0.0
  %719 = vmatpush1.msra.mxu0 0.0
  %720 = vmatprep.subr.mxu0 0.0
  %721 = vmatpush1.msra.mxu0 0.0
  %722 = vmatprep.mubr.f32.mxu0 0.0
  %723 = vmatmul.mubr.f32.gmra.mrb[0].mxu0 %v611
  %v724 = vpop.f32.mrb[0].mxu0
  %v725 = vadd.f32 %v607, %v724
  %v726 = vpop.f32.mrb[0].mxu0
  %727 = vmatprep.mubr.f32.mxu0 0.0
  %728 = vmatmul.mubr.f32.gmra.mrb[0].mxu0 %v614
  %v729 = vpop.f32.mrb[0].mxu0
  %v730 = vadd.f32 %v607, %v729
  %v731 = vpop.f32.mrb[0].mxu0
  %732 = vmatprep.mubr.f32.mxu0 0.0
  %733 = vmatmul.mubr.f32.gmra.mrb[0].mxu0 %v617
  %v734 = vpop.f32.mrb[0].mxu0
  %v735 = vadd.f32 %v607, %v734
  %v736 = vpop.f32.mrb[0].mxu0
  %737 = vmatprep.mubr.f32.mxu0 0.0
  %738 = vmatmul.mubr.f32.gmra.mrb[0].mxu0 %v620
  %v739 = vpop.f32.mrb[0].mxu0
  %v740 = vadd.f32 %v607, %v739
  %v741 = vpop.f32.mrb[0].mxu0
  %742 = vmatprep.mubr.f32.mxu0 0.0
  %743 = vmatmul.mubr.f32.gmra.mrb[0].mxu0 %v623
  %v744 = vpop.f32.mrb[0].mxu0
  %v745 = vadd.f32 %v607, %v744
  %v746 = vpop.f32.mrb[0].mxu0
  %747 = vmatprep.mubr.f32.mxu0 0.0
  %748 = vmatmul.mubr.f32.gmra.mrb[0].mxu0 %v626
  %v749 = vpop.f32.mrb[0].mxu0
  %v750 = vadd.f32 %v607, %v749
  %v751 = vpop.f32.mrb[0].mxu0
  %752 = vmatprep.mubr.f32.mxu0 0.0
  %753 = vmatmul.mubr.f32.gmra.mrb[0].mxu0 %v629
  %v754 = vpop.f32.mrb[0].mxu0
  %v755 = vadd.f32 %v607, %v754
  %v756 = vpop.f32.mrb[0].mxu0
  %757 = vmatprep.mubr.f32.mxu0 0.0
  %758 = vmatmul.mubr.f32.gmra.mrb[0].mxu0 %v632
  %v759 = vpop.f32.mrb[0].mxu0
  %v760 = vadd.f32 %v607, %v759
  %v761 = vpop.f32.mrb[0].mxu0
  %762 = vmatprep.mubr.f32.mxu0 0.0
  %763 = vmatmul.mubr.f32.gmra.mrb[0].mxu0 %v635
  %v764 = vpop.f32.mrb[0].mxu0
  %v765 = vadd.f32 %v607, %v764
  %v766 = vpop.f32.mrb[0].mxu0
  %767 = vmatprep.mubr.f32.mxu0 0.0
  %768 = vmatmul.mubr.f32.gmra.mrb[0].mxu0 %v638
  %v769 = vpop.f32.mrb[0].mxu0
  %v770 = vadd.f32 %v607, %v769
  %v771 = vpop.f32.mrb[0].mxu0
  %772 = vmatprep.mubr.f32.mxu0 0.0
  %773 = vmatmul.mubr.f32.gmra.mrb[0].mxu0 %v641
  %v774 = vpop.f32.mrb[0].mxu0
  %v775 = vadd.f32 %v607, %v774
  %v776 = vpop.f32.mrb[0].mxu0
  %777 = vmatprep.mubr.f32.mxu0 0.0
  %778 = vmatmul.mubr.f32.gmra.mrb[0].mxu0 %v644
  %v779 = vpop.f32.mrb[0].mxu0
  %v780 = vadd.f32 %v607, %v779
  %v781 = vpop.f32.mrb[0].mxu0
  %782 = vmatprep.mubr.f32.mxu0 0.0
  %783 = vmatmul.mubr.f32.gmra.mrb[0].mxu0 %v647
  %v784 = vpop.f32.mrb[0].mxu0
  %v785 = vadd.f32 %v607, %v784
  %v786 = vpop.f32.mrb[0].mxu0
  %787 = vmatprep.mubr.f32.mxu0 0.0
  %788 = vmatmul.mubr.f32.gmra.mrb[0].mxu0 %v650
  %v789 = vpop.f32.mrb[0].mxu0
  %v790 = vadd.f32 %v607, %v789
  %v791 = vpop.f32.mrb[0].mxu0
  %792 = vmatprep.mubr.f32.mxu0 0.0
  %793 = vmatmul.mubr.f32.gmra.mrb[0].mxu0 %v653
  %v794 = vpop.f32.mrb[0].mxu0
  %v795 = vadd.f32 %v607, %v794
  %v796 = vpop.f32.mrb[0].mxu0
  %797 = vmatprep.mubr.f32.mxu0 0.0
  %798 = vmatmul.mubr.f32.gmra.mrb[0].mxu0 %v656
  %v799 = vpop.f32.mrb[0].mxu0
  %v800 = vadd.f32 %v607, %v799
  %v801 = vpop.f32.mrb[0].mxu0
  %802 = vdwg.mxu0
  %v803 = vtanh.pop %v725
  %v804 = vtanh.pop %v730
  %v805 = vtanh.pop %v735
  %v806 = vtanh.pop %v740
  %v807 = vtanh.pop %v745
  %v808 = vtanh.pop %v750
  %v809 = vtanh.pop %v755
  %v810 = vtanh.pop %v760
  %v811 = vtanh.pop %v765
  %v812 = vtanh.pop %v770
  %v813 = vtanh.pop %v775
  %v814 = vtanh.pop %v780
  %v815 = vtanh.pop %v785
  %v816 = vtanh.pop %v790
  %v817 = vtanh.pop %v795
  %v818 = vtanh.pop %v800
  %819 = vst.msk [vmem:[%s9] sm:$0xff] %vm136, %v803
  %820 = vst.msk [vmem:[%s9 + $0x8] sm:$0xff] %vm136, %v804
  %821 = vst.msk [vmem:[%s9 + $0x10] sm:$0xff] %vm136, %v805
  %822 = vst.msk [vmem:[%s9 + $0x18] sm:$0xff] %vm136, %v806
  %823 = vst.msk [vmem:[%s9 + $0x20] sm:$0xff] %vm136, %v807
  %824 = vst.msk [vmem:[%s9 + $0x28] sm:$0xff] %vm136, %v808
  %825 = vst.msk [vmem:[%s9 + $0x30] sm:$0xff] %vm136, %v809
  %826 = vst.msk [vmem:[%s9 + $0x38] sm:$0xff] %vm136, %v810
  %827 = vst.msk [vmem:[%s9 + $0x40] sm:$0xff] %vm136, %v811
  %828 = vst.msk [vmem:[%s9 + $0x48] sm:$0xff] %vm136, %v812
  %829 = vst.msk [vmem:[%s9 + $0x50] sm:$0xff] %vm136, %v813
  %830 = vst.msk [vmem:[%s9 + $0x58] sm:$0xff] %vm136, %v814
  %831 = vst.msk [vmem:[%s9 + $0x60] sm:$0xff] %vm136, %v815
  %832 = vst.msk [vmem:[%s9 + $0x68] sm:$0xff] %vm136, %v816
  %833 = vst.msk [vmem:[%s9 + $0x70] sm:$0xff] %vm136, %v817
  %834 = vst.msk [vmem:[%s9 + $0x78] sm:$0xff] %vm136, %v818
  // Predicated region
  $region38: #{tpu_custom_call.1} parent=0 // pred_check
    _
  $region39: #{tpu_custom_call.1} parent=0 // pred_check_branch
    %836 = sbr.rel (0) target = $region41
  $region40: #{tpu_custom_call.1} parent=0 // pred_region
    _
  $region41: #{tpu_custom_call.1} parent=0 // pred_fallthru
    _
  // Predicated region
  $region42: #{tpu_custom_call.1} parent=0 // pred_check
    _
  $region43: #{tpu_custom_call.1} parent=0 // pred_check_branch
    %838 = sbr.rel (0) target = $region45
  $region44: #{tpu_custom_call.1} parent=0 // pred_region
    _
  $region45: #{tpu_custom_call.1} parent=0 // pred_fallthru
    _

</llo_original>
